<compile_context>
chip_gen: v6e
topology: v6e:2x2x1
jax: 0.10.0
libtpu: 0.0.40
codegen_flags: <defaults>
</compile_context>

<pallas_src>
import functools

import jax
import jax.numpy as jnp
from jax.experimental import pallas as pl
from jax.experimental.pallas import tpu as pltpu

EPS = 1e-5  # nn.BatchNorm2d default eps


def _residual_block_kernel(x_ref, mask_ref, w1_ref, g1_ref, be1_ref,
                           w2_ref, g2_ref, be2_ref,
                           o_ref, patch_ref, *, n, h, w, c_pad, compute_dtype):
    m = n * h * w

    x = x_ref[...]          # (c_pad, M) f32
    masks = mask_ref[...]   # (8, M)  compute_dtype, non-center taps only

    # Tap table: (lane offset, mask row index or None for the always-valid
    # center tap).  Built at trace time (pure Python), zero runtime cost.
    taps = []
    mj = 0
    for dy in (-1, 0, 1):
        for dx in (-1, 0, 1):
            off = dy * w + dx
            if dy == 0 and dx == 0:
                taps.append((0, None))
            else:
                taps.append((off, mj))
                mj += 1

    def im2col(v):
        # (9*c_pad, M) patch in VMEM scratch.  Shifts along the flattened
        # spatial (lane) axis are circular rolls (XLU); wrapped positions are
        # exactly the masked-out ones, so roll + mask == zero-padded 3x3
        # neighborhood gathering.  c_pad is a sublane-tile multiple, so every
        # tap store is a full-tile, unmasked vst.
        vc = v.astype(compute_dtype)
        for k, (off, j) in enumerate(taps):
            if j is None:
                block = vc
            else:
                block = pltpu.roll(vc, shift=(-off) % m, axis=1) * masks[j:j + 1, :]
            patch_ref[pl.ds(k * c_pad, c_pad), :] = block
        return patch_ref[...]

    def bn_maybe_relu(v, gamma, beta, relu):
        # Training-mode BN (biased variance), two-pass (centered) form to
        # avoid E[x^2]-E[x]^2 cancellation, folded into a per-channel affine.
        inv_m = 1.0 / m
        mean = jnp.sum(v, axis=1, keepdims=True) * inv_m
        d = v - mean
        var = jnp.sum(d * d, axis=1, keepdims=True) * inv_m
        scale = gamma * jax.lax.rsqrt(var + EPS)
        out = d * scale + beta
        return jnp.maximum(out, 0.0) if relu else out

    # ---- conv1 -> bn1 -> relu ----------------------------------------------
    h1 = jnp.dot(w1_ref[...], im2col(x), preferred_element_type=jnp.float32)
    h1 = bn_maybe_relu(h1, g1_ref[...], be1_ref[...], relu=True)

    # ---- conv2 -> bn2 --------------------------------------------------------
    h2 = jnp.dot(w2_ref[...], im2col(h1), preferred_element_type=jnp.float32)
    h2 = bn_maybe_relu(h2, g2_ref[...], be2_ref[...], relu=False)

    # ---- residual add + relu (lane-dense, unmasked stores) -------------------
    o_ref[...] = jnp.maximum(h2 + x, 0.0).astype(o_ref.dtype)


def _boundary_masks(n, h, w):
    """(8, N*H*W) f32 validity masks for the 8 non-center 3x3 taps."""
    m = n * h * w
    col = jnp.arange(m, dtype=jnp.int32)
    ww = col % w
    hh = (col // w) % h
    rows = []
    for dy in (-1, 0, 1):
        for dx in (-1, 0, 1):
            if dy == 0 and dx == 0:
                continue
            valid = ((hh + dy >= 0) & (hh + dy < h) &
                     (ww + dx >= 0) & (ww + dx < w))
            rows.append(valid.astype(jnp.float32))
    return jnp.stack(rows)  # (8, m)


def _flatten_conv_weight(w_hwio, c_in_pad, c_out_pad):
    """(3,3,Cin,Cout) HWIO -> (c_out_pad, 9*c_in_pad), tap-major / cin-minor,
    zero-padded so padded channels contribute exactly zero."""
    kh, kw, ci, co = w_hwio.shape
    wt = jnp.transpose(w_hwio.reshape(kh * kw, ci, co), (2, 0, 1))  # (co, 9, ci)
    wt = jnp.pad(wt, ((0, c_out_pad - co), (0, 0), (0, c_in_pad - ci)))
    return wt.reshape(c_out_pad, (kh * kw) * c_in_pad)


def _pad_vec(v, c_pad):
    c = v.shape[0]
    return jnp.pad(v.astype(jnp.float32), (0, c_pad - c)).reshape(c_pad, 1)


def _vmem_limit_bytes():
    # Generation-parameterized: ~85% of physical VMEM, capped at 100 MiB
    # (v5e/v6e: 128 MiB physical; v7x: 64 MiB).  Fallback is safe everywhere.
    try:
        cap = pltpu.get_tpu_info().vmem_capacity_bytes
        return min(int(0.85 * cap), 100 * 1024 * 1024)
    except Exception:
        return 64 * 1024 * 1024


def residual_block(x_nchw, params):
    n, c, h, w = x_nchw.shape
    m = n * h * w

    # bf16 MXU fast path for realistic channel counts; f32 at toy sizes.
    use_bf16 = c >= 16
    compute_dtype = jnp.bfloat16 if use_bf16 else jnp.float32
    sublane = 16 if use_bf16 else 8
    c_pad = ((c + sublane - 1) // sublane) * sublane

    # glue: NCHW -> (c_pad, N*H*W): channels on sublanes (tile-padded),
    # flattened spatial on lanes (lane-dense, M a multiple of 128).
    x_cm = jnp.transpose(x_nchw, (1, 0, 2, 3)).reshape(c, m).astype(jnp.float32)
    x_cm = jnp.pad(x_cm, ((0, c_pad - c), (0, 0)))

    masks = _boundary_masks(n, h, w).astype(compute_dtype)          # (8, M)
    w1 = _flatten_conv_weight(params["w1"], c_pad, c_pad).astype(compute_dtype)
    w2 = _flatten_conv_weight(params["w2"], c_pad, c_pad).astype(compute_dtype)
    g1, be1 = _pad_vec(params["g1"], c_pad), _pad_vec(params["be1"], c_pad)
    g2, be2 = _pad_vec(params["g2"], c_pad), _pad_vec(params["be2"], c_pad)
    # (conv biases b1/b2 are intentionally not passed: training-mode BN mean
    #  subtraction cancels a per-channel constant exactly.)

    kernel = functools.partial(_residual_block_kernel, n=n, h=h, w=w,
                               c_pad=c_pad, compute_dtype=compute_dtype)

    out_cm = pl.pallas_call(
        kernel,
        out_shape=jax.ShapeDtypeStruct((c_pad, m), jnp.float32),
        in_specs=[pl.BlockSpec(memory_space=pltpu.MemorySpace.VMEM)] * 8,
        out_specs=pl.BlockSpec(memory_space=pltpu.MemorySpace.VMEM),
        scratch_shapes=[pltpu.VMEM((9 * c_pad, m), compute_dtype)],  # im2col patch
        compiler_params=pltpu.CompilerParams(vmem_limit_bytes=_vmem_limit_bytes()),
    )(x_cm, masks, w1, g1, be1, w2, g2, be2)

    # glue: (c_pad, N*H*W) -> NCHW (drop padded channels)
    return jnp.transpose(out_cm[:c].reshape(c, n, h, w), (1, 0, 2, 3))


def _reference(x_nchw, p):
    """Pure-JAX reference matching the PyTorch module (conv WITH bias)."""
    x = jnp.transpose(x_nchw, (0, 2, 3, 1))  # NHWC

    def conv(v, w_hwio, b):
        y = jax.lax.conv_general_dilated(
            v, w_hwio, window_strides=(1, 1), padding="SAME",
            dimension_numbers=("NHWC", "HWIO", "NHWC"),
            precision=jax.lax.Precision.HIGHEST)
        return y + b.reshape(1, 1, 1, -1)

    def bn(v, g, be):
        mean = jnp.mean(v, axis=(0, 1, 2), keepdims=True)
        var = jnp.mean((v - mean) ** 2, axis=(0, 1, 2), keepdims=True)
        return ((v - mean) * jax.lax.rsqrt(var + EPS) * g.reshape(1, 1, 1, -1)
                + be.reshape(1, 1, 1, -1))

    h1 = jnp.maximum(bn(conv(x, p["w1"], p["b1"]), p["g1"], p["be1"]), 0.0)
    h2 = bn(conv(h1, p["w2"], p["b2"]), p["g2"], p["be2"])
    out = jnp.maximum(h2 + x, 0.0)
    return jnp.transpose(out, (0, 3, 1, 2))


if __name__ == "__main__":
    N, C, H, W = 2, 4, 16, 16  # in_channels == out_channels (required by `out += x`)
    key = jax.random.PRNGKey(0)
    ks = jax.random.split(key, 9)

    x = jax.random.normal(ks[0], (N, C, H, W), jnp.float32)
    params = dict(
        w1=0.2 * jax.random.normal(ks[1], (3, 3, C, C), jnp.float32),  # HWIO
        b1=0.1 * jax.random.normal(ks[2], (C,), jnp.float32),
        g1=1.0 + 0.1 * jax.random.normal(ks[3], (C,), jnp.float32),
        be1=0.1 * jax.random.normal(ks[4], (C,), jnp.float32),
        w2=0.2 * jax.random.normal(ks[5], (3, 3, C, C), jnp.float32),
        b2=0.1 * jax.random.normal(ks[6], (C,), jnp.float32),
        g2=1.0 + 0.1 * jax.random.normal(ks[7], (C,), jnp.float32),
        be2=0.1 * jax.random.normal(ks[8], (C,), jnp.float32),
    )

    out = jax.block_until_ready(residual_block(x, params))
    ref = jax.block_until_ready(_reference(x, params))

    assert out.shape == (N, C, H, W), out.shape
    err = float(jnp.max(jnp.abs(out - ref)))
    assert err < 1e-2, f"max abs err {err}"
    print("KERNEL_OK")
</pallas_src>

<mosaic_0001>
module attributes {stable_mosaic.version = 11 : i64} {
  func.func @_residual_block_kernel(%arg0: memref<8x512xf32, #tpu.memory_space<vmem>>, %arg1: memref<8x512xf32, #tpu.memory_space<vmem>>, %arg2: memref<8x72xf32, #tpu.memory_space<vmem>>, %arg3: memref<8x1xf32, #tpu.memory_space<vmem>>, %arg4: memref<8x1xf32, #tpu.memory_space<vmem>>, %arg5: memref<8x72xf32, #tpu.memory_space<vmem>>, %arg6: memref<8x1xf32, #tpu.memory_space<vmem>>, %arg7: memref<8x1xf32, #tpu.memory_space<vmem>>, %arg8: memref<8x512xf32, #tpu.memory_space<vmem>>, %arg9: memref<72x512xf32, #tpu.memory_space<vmem>>) attributes {dimension_semantics = [], scalar_prefetch = 0 : i64, scratch_operands = 1 : i64, tpu.core_type = #tpu.core_type<tc>} {
    %c0 = arith.constant 0 : index
    %c0_0 = arith.constant 0 : index
    %0 = vector.load %arg0[%c0, %c0_0] : memref<8x512xf32, #tpu.memory_space<vmem>>, vector<8x512xf32>
    %c0_1 = arith.constant 0 : index
    %c0_2 = arith.constant 0 : index
    %1 = vector.load %arg1[%c0_1, %c0_2] : memref<8x512xf32, #tpu.memory_space<vmem>>, vector<8x512xf32>
    %c0_3 = arith.constant 0 : index
    %c0_4 = arith.constant 0 : index
    %2 = vector.load %arg2[%c0_3, %c0_4] : memref<8x72xf32, #tpu.memory_space<vmem>>, vector<8x72xf32>
    %c17_i32 = arith.constant 17 : i32
    %3 = tpu.dynamic_rotate %0 by %c17_i32 dim 1 : vector<8x512xf32>, i32 -> vector<8x512xf32>
    %4 = vector.extract_strided_slice %1 {offsets = [0, 0], sizes = [1, 512], strides = [1, 1]} : vector<8x512xf32> to vector<1x512xf32>
    %5 = vector.broadcast %4 : vector<1x512xf32> to vector<8x512xf32>
    %6 = arith.mulf %3, %5 : vector<8x512xf32>
    %c0_5 = arith.constant 0 : index
    %c0_6 = arith.constant 0 : index
    %7 = vector.load %arg9[%c0_5, %c0_6] : memref<72x512xf32, #tpu.memory_space<vmem>>, vector<8x512xf32>
    tpu.vector_store %arg9[%c0_5, %c0_6], %6 {strides = array<i32>} : memref<72x512xf32, #tpu.memory_space<vmem>>, vector<8x512xf32>,
    %c16_i32 = arith.constant 16 : i32
    %8 = tpu.dynamic_rotate %0 by %c16_i32 dim 1 : vector<8x512xf32>, i32 -> vector<8x512xf32>
    %9 = vector.extract_strided_slice %1 {offsets = [1, 0], sizes = [1, 512], strides = [1, 1]} : vector<8x512xf32> to vector<1x512xf32>
    %10 = vector.broadcast %9 : vector<1x512xf32> to vector<8x512xf32>
    %11 = arith.mulf %8, %10 : vector<8x512xf32>
    %c8 = arith.constant 8 : index
    %c0_7 = arith.constant 0 : index
    %12 = vector.load %arg9[%c8, %c0_7] : memref<72x512xf32, #tpu.memory_space<vmem>>, vector<8x512xf32>
    tpu.vector_store %arg9[%c8, %c0_7], %11 {strides = array<i32>} : memref<72x512xf32, #tpu.memory_space<vmem>>, vector<8x512xf32>,
    %c15_i32 = arith.constant 15 : i32
    %13 = tpu.dynamic_rotate %0 by %c15_i32 dim 1 : vector<8x512xf32>, i32 -> vector<8x512xf32>
    %14 = vector.extract_strided_slice %1 {offsets = [2, 0], sizes = [1, 512], strides = [1, 1]} : vector<8x512xf32> to vector<1x512xf32>
    %15 = vector.broadcast %14 : vector<1x512xf32> to vector<8x512xf32>
    %16 = arith.mulf %13, %15 : vector<8x512xf32>
    %c16 = arith.constant 16 : index
    %c0_8 = arith.constant 0 : index
    %17 = vector.load %arg9[%c16, %c0_8] : memref<72x512xf32, #tpu.memory_space<vmem>>, vector<8x512xf32>
    tpu.vector_store %arg9[%c16, %c0_8], %16 {strides = array<i32>} : memref<72x512xf32, #tpu.memory_space<vmem>>, vector<8x512xf32>,
    %c1_i32 = arith.constant 1 : i32
    %18 = tpu.dynamic_rotate %0 by %c1_i32 dim 1 : vector<8x512xf32>, i32 -> vector<8x512xf32>
    %19 = vector.extract_strided_slice %1 {offsets = [3, 0], sizes = [1, 512], strides = [1, 1]} : vector<8x512xf32> to vector<1x512xf32>
    %20 = vector.broadcast %19 : vector<1x512xf32> to vector<8x512xf32>
    %21 = arith.mulf %18, %20 : vector<8x512xf32>
    %c24 = arith.constant 24 : index
    %c0_9 = arith.constant 0 : index
    %22 = vector.load %arg9[%c24, %c0_9] : memref<72x512xf32, #tpu.memory_space<vmem>>, vector<8x512xf32>
    tpu.vector_store %arg9[%c24, %c0_9], %21 {strides = array<i32>} : memref<72x512xf32, #tpu.memory_space<vmem>>, vector<8x512xf32>,
    %c32 = arith.constant 32 : index
    %c0_10 = arith.constant 0 : index
    %23 = vector.load %arg9[%c32, %c0_10] : memref<72x512xf32, #tpu.memory_space<vmem>>, vector<8x512xf32>
    tpu.vector_store %arg9[%c32, %c0_10], %0 {strides = array<i32>} : memref<72x512xf32, #tpu.memory_space<vmem>>, vector<8x512xf32>,
    %c511_i32 = arith.constant 511 : i32
    %24 = tpu.dynamic_rotate %0 by %c511_i32 dim 1 : vector<8x512xf32>, i32 -> vector<8x512xf32>
    %25 = vector.extract_strided_slice %1 {offsets = [4, 0], sizes = [1, 512], strides = [1, 1]} : vector<8x512xf32> to vector<1x512xf32>
    %26 = vector.broadcast %25 : vector<1x512xf32> to vector<8x512xf32>
    %27 = arith.mulf %24, %26 : vector<8x512xf32>
    %c40 = arith.constant 40 : index
    %c0_11 = arith.constant 0 : index
    %28 = vector.load %arg9[%c40, %c0_11] : memref<72x512xf32, #tpu.memory_space<vmem>>, vector<8x512xf32>
    tpu.vector_store %arg9[%c40, %c0_11], %27 {strides = array<i32>} : memref<72x512xf32, #tpu.memory_space<vmem>>, vector<8x512xf32>,
    %c497_i32 = arith.constant 497 : i32
    %29 = tpu.dynamic_rotate %0 by %c497_i32 dim 1 : vector<8x512xf32>, i32 -> vector<8x512xf32>
    %30 = vector.extract_strided_slice %1 {offsets = [5, 0], sizes = [1, 512], strides = [1, 1]} : vector<8x512xf32> to vector<1x512xf32>
    %31 = vector.broadcast %30 : vector<1x512xf32> to vector<8x512xf32>
    %32 = arith.mulf %29, %31 : vector<8x512xf32>
    %c48 = arith.constant 48 : index
    %c0_12 = arith.constant 0 : index
    %33 = vector.load %arg9[%c48, %c0_12] : memref<72x512xf32, #tpu.memory_space<vmem>>, vector<8x512xf32>
    tpu.vector_store %arg9[%c48, %c0_12], %32 {strides = array<i32>} : memref<72x512xf32, #tpu.memory_space<vmem>>, vector<8x512xf32>,
    %c496_i32 = arith.constant 496 : i32
    %34 = tpu.dynamic_rotate %0 by %c496_i32 dim 1 : vector<8x512xf32>, i32 -> vector<8x512xf32>
    %35 = vector.extract_strided_slice %1 {offsets = [6, 0], sizes = [1, 512], strides = [1, 1]} : vector<8x512xf32> to vector<1x512xf32>
    %36 = vector.broadcast %35 : vector<1x512xf32> to vector<8x512xf32>
    %37 = arith.mulf %34, %36 : vector<8x512xf32>
    %c56 = arith.constant 56 : index
    %c0_13 = arith.constant 0 : index
    %38 = vector.load %arg9[%c56, %c0_13] : memref<72x512xf32, #tpu.memory_space<vmem>>, vector<8x512xf32>
    tpu.vector_store %arg9[%c56, %c0_13], %37 {strides = array<i32>} : memref<72x512xf32, #tpu.memory_space<vmem>>, vector<8x512xf32>,
    %c495_i32 = arith.constant 495 : i32
    %39 = tpu.dynamic_rotate %0 by %c495_i32 dim 1 : vector<8x512xf32>, i32 -> vector<8x512xf32>
    %40 = vector.extract_strided_slice %1 {offsets = [7, 0], sizes = [1, 512], strides = [1, 1]} : vector<8x512xf32> to vector<1x512xf32>
    %41 = vector.broadcast %40 : vector<1x512xf32> to vector<8x512xf32>
    %42 = arith.mulf %39, %41 : vector<8x512xf32>
    %c64 = arith.constant 64 : index
    %c0_14 = arith.constant 0 : index
    %43 = vector.load %arg9[%c64, %c0_14] : memref<72x512xf32, #tpu.memory_space<vmem>>, vector<8x512xf32>
    tpu.vector_store %arg9[%c64, %c0_14], %42 {strides = array<i32>} : memref<72x512xf32, #tpu.memory_space<vmem>>, vector<8x512xf32>,
    %c0_15 = arith.constant 0 : index
    %c0_16 = arith.constant 0 : index
    %44 = vector.load %arg9[%c0_15, %c0_16] : memref<72x512xf32, #tpu.memory_space<vmem>>, vector<72x512xf32>
    %cst = arith.constant dense<0.000000e+00> : vector<8x512xf32>
    %45 = tpu.matmul %2, %44, %cst {dimension_numbers = #tpu.dot_dimension_numbers<[1], [0], [0], [1], [0, 0, 1, 1], [], []>} : vector<8x72xf32>, vector<72x512xf32>, vector<8x512xf32> -> vector<8x512xf32>
    %c0_17 = arith.constant 0 : index
    %c0_18 = arith.constant 0 : index
    %46 = vector.load %arg3[%c0_17, %c0_18] : memref<8x1xf32, #tpu.memory_space<vmem>>, vector<8x1xf32>
    %c0_19 = arith.constant 0 : index
    %c0_20 = arith.constant 0 : index
    %47 = vector.load %arg4[%c0_19, %c0_20] : memref<8x1xf32, #tpu.memory_space<vmem>>, vector<8x1xf32>
    %cst_21 = arith.constant dense<0.000000e+00> : vector<8xf32>
    %48 = vector.multi_reduction <add>, %45, %cst_21 [1] : vector<8x512xf32> to vector<8xf32>
    %49 = vector.shape_cast %48 : vector<8xf32> to vector<8x1xf32>
    %cst_22 = arith.constant 0.001953125 : f32
    %50 = vector.broadcast %cst_22 : f32 to vector<8x1xf32>
    %51 = arith.mulf %49, %50 : vector<8x1xf32>
    %52 = vector.broadcast %51 : vector<8x1xf32> to vector<8x512xf32>
    %53 = arith.subf %45, %52 : vector<8x512xf32>
    %54 = arith.mulf %53, %53 : vector<8x512xf32>
    %cst_23 = arith.constant dense<0.000000e+00> : vector<8xf32>
    %55 = vector.multi_reduction <add>, %54, %cst_23 [1] : vector<8x512xf32> to vector<8xf32>
    %56 = vector.shape_cast %55 : vector<8xf32> to vector<8x1xf32>
    %cst_24 = arith.constant 0.001953125 : f32
    %57 = vector.broadcast %cst_24 : f32 to vector<8x1xf32>
    %58 = arith.mulf %56, %57 : vector<8x1xf32>
    %cst_25 = arith.constant 9.99999974E-6 : f32
    %59 = vector.broadcast %cst_25 : f32 to vector<8x1xf32>
    %60 = arith.addf %58, %59 : vector<8x1xf32>
    %61 = math.rsqrt %60 : vector<8x1xf32>
    %62 = arith.mulf %46, %61 : vector<8x1xf32>
    %63 = vector.broadcast %62 : vector<8x1xf32> to vector<8x512xf32>
    %64 = arith.mulf %53, %63 : vector<8x512xf32>
    %65 = vector.broadcast %47 : vector<8x1xf32> to vector<8x512xf32>
    %66 = arith.addf %64, %65 : vector<8x512xf32>
    %cst_26 = arith.constant 0.000000e+00 : f32
    %67 = vector.broadcast %cst_26 : f32 to vector<8x512xf32>
    %68 = arith.maximumf %66, %67 : vector<8x512xf32>
    %c0_27 = arith.constant 0 : index
    %c0_28 = arith.constant 0 : index
    %69 = vector.load %arg5[%c0_27, %c0_28] : memref<8x72xf32, #tpu.memory_space<vmem>>, vector<8x72xf32>
    %c17_i32_29 = arith.constant 17 : i32
    %70 = tpu.dynamic_rotate %68 by %c17_i32_29 dim 1 : vector<8x512xf32>, i32 -> vector<8x512xf32>
    %71 = vector.extract_strided_slice %1 {offsets = [0, 0], sizes = [1, 512], strides = [1, 1]} : vector<8x512xf32> to vector<1x512xf32>
    %72 = vector.broadcast %71 : vector<1x512xf32> to vector<8x512xf32>
    %73 = arith.mulf %70, %72 : vector<8x512xf32>
    %c0_30 = arith.constant 0 : index
    %c0_31 = arith.constant 0 : index
    %74 = vector.load %arg9[%c0_30, %c0_31] : memref<72x512xf32, #tpu.memory_space<vmem>>, vector<8x512xf32>
    tpu.vector_store %arg9[%c0_30, %c0_31], %73 {strides = array<i32>} : memref<72x512xf32, #tpu.memory_space<vmem>>, vector<8x512xf32>,
    %c16_i32_32 = arith.constant 16 : i32
    %75 = tpu.dynamic_rotate %68 by %c16_i32_32 dim 1 : vector<8x512xf32>, i32 -> vector<8x512xf32>
    %76 = vector.extract_strided_slice %1 {offsets = [1, 0], sizes = [1, 512], strides = [1, 1]} : vector<8x512xf32> to vector<1x512xf32>
    %77 = vector.broadcast %76 : vector<1x512xf32> to vector<8x512xf32>
    %78 = arith.mulf %75, %77 : vector<8x512xf32>
    %c8_33 = arith.constant 8 : index
    %c0_34 = arith.constant 0 : index
    %79 = vector.load %arg9[%c8_33, %c0_34] : memref<72x512xf32, #tpu.memory_space<vmem>>, vector<8x512xf32>
    tpu.vector_store %arg9[%c8_33, %c0_34], %78 {strides = array<i32>} : memref<72x512xf32, #tpu.memory_space<vmem>>, vector<8x512xf32>,
    %c15_i32_35 = arith.constant 15 : i32
    %80 = tpu.dynamic_rotate %68 by %c15_i32_35 dim 1 : vector<8x512xf32>, i32 -> vector<8x512xf32>
    %81 = vector.extract_strided_slice %1 {offsets = [2, 0], sizes = [1, 512], strides = [1, 1]} : vector<8x512xf32> to vector<1x512xf32>
    %82 = vector.broadcast %81 : vector<1x512xf32> to vector<8x512xf32>
    %83 = arith.mulf %80, %82 : vector<8x512xf32>
    %c16_36 = arith.constant 16 : index
    %c0_37 = arith.constant 0 : index
    %84 = vector.load %arg9[%c16_36, %c0_37] : memref<72x512xf32, #tpu.memory_space<vmem>>, vector<8x512xf32>
    tpu.vector_store %arg9[%c16_36, %c0_37], %83 {strides = array<i32>} : memref<72x512xf32, #tpu.memory_space<vmem>>, vector<8x512xf32>,
    %c1_i32_38 = arith.constant 1 : i32
    %85 = tpu.dynamic_rotate %68 by %c1_i32_38 dim 1 : vector<8x512xf32>, i32 -> vector<8x512xf32>
    %86 = vector.extract_strided_slice %1 {offsets = [3, 0], sizes = [1, 512], strides = [1, 1]} : vector<8x512xf32> to vector<1x512xf32>
    %87 = vector.broadcast %86 : vector<1x512xf32> to vector<8x512xf32>
    %88 = arith.mulf %85, %87 : vector<8x512xf32>
    %c24_39 = arith.constant 24 : index
    %c0_40 = arith.constant 0 : index
    %89 = vector.load %arg9[%c24_39, %c0_40] : memref<72x512xf32, #tpu.memory_space<vmem>>, vector<8x512xf32>
    tpu.vector_store %arg9[%c24_39, %c0_40], %88 {strides = array<i32>} : memref<72x512xf32, #tpu.memory_space<vmem>>, vector<8x512xf32>,
    %c32_41 = arith.constant 32 : index
    %c0_42 = arith.constant 0 : index
    %90 = vector.load %arg9[%c32_41, %c0_42] : memref<72x512xf32, #tpu.memory_space<vmem>>, vector<8x512xf32>
    tpu.vector_store %arg9[%c32_41, %c0_42], %68 {strides = array<i32>} : memref<72x512xf32, #tpu.memory_space<vmem>>, vector<8x512xf32>,
    %c511_i32_43 = arith.constant 511 : i32
    %91 = tpu.dynamic_rotate %68 by %c511_i32_43 dim 1 : vector<8x512xf32>, i32 -> vector<8x512xf32>
    %92 = vector.extract_strided_slice %1 {offsets = [4, 0], sizes = [1, 512], strides = [1, 1]} : vector<8x512xf32> to vector<1x512xf32>
    %93 = vector.broadcast %92 : vector<1x512xf32> to vector<8x512xf32>
    %94 = arith.mulf %91, %93 : vector<8x512xf32>
    %c40_44 = arith.constant 40 : index
    %c0_45 = arith.constant 0 : index
    %95 = vector.load %arg9[%c40_44, %c0_45] : memref<72x512xf32, #tpu.memory_space<vmem>>, vector<8x512xf32>
    tpu.vector_store %arg9[%c40_44, %c0_45], %94 {strides = array<i32>} : memref<72x512xf32, #tpu.memory_space<vmem>>, vector<8x512xf32>,
    %c497_i32_46 = arith.constant 497 : i32
    %96 = tpu.dynamic_rotate %68 by %c497_i32_46 dim 1 : vector<8x512xf32>, i32 -> vector<8x512xf32>
    %97 = vector.extract_strided_slice %1 {offsets = [5, 0], sizes = [1, 512], strides = [1, 1]} : vector<8x512xf32> to vector<1x512xf32>
    %98 = vector.broadcast %97 : vector<1x512xf32> to vector<8x512xf32>
    %99 = arith.mulf %96, %98 : vector<8x512xf32>
    %c48_47 = arith.constant 48 : index
    %c0_48 = arith.constant 0 : index
    %100 = vector.load %arg9[%c48_47, %c0_48] : memref<72x512xf32, #tpu.memory_space<vmem>>, vector<8x512xf32>
    tpu.vector_store %arg9[%c48_47, %c0_48], %99 {strides = array<i32>} : memref<72x512xf32, #tpu.memory_space<vmem>>, vector<8x512xf32>,
    %c496_i32_49 = arith.constant 496 : i32
    %101 = tpu.dynamic_rotate %68 by %c496_i32_49 dim 1 : vector<8x512xf32>, i32 -> vector<8x512xf32>
    %102 = vector.extract_strided_slice %1 {offsets = [6, 0], sizes = [1, 512], strides = [1, 1]} : vector<8x512xf32> to vector<1x512xf32>
    %103 = vector.broadcast %102 : vector<1x512xf32> to vector<8x512xf32>
    %104 = arith.mulf %101, %103 : vector<8x512xf32>
    %c56_50 = arith.constant 56 : index
    %c0_51 = arith.constant 0 : index
    %105 = vector.load %arg9[%c56_50, %c0_51] : memref<72x512xf32, #tpu.memory_space<vmem>>, vector<8x512xf32>
    tpu.vector_store %arg9[%c56_50, %c0_51], %104 {strides = array<i32>} : memref<72x512xf32, #tpu.memory_space<vmem>>, vector<8x512xf32>,
    %c495_i32_52 = arith.constant 495 : i32
    %106 = tpu.dynamic_rotate %68 by %c495_i32_52 dim 1 : vector<8x512xf32>, i32 -> vector<8x512xf32>
    %107 = vector.extract_strided_slice %1 {offsets = [7, 0], sizes = [1, 512], strides = [1, 1]} : vector<8x512xf32> to vector<1x512xf32>
    %108 = vector.broadcast %107 : vector<1x512xf32> to vector<8x512xf32>
    %109 = arith.mulf %106, %108 : vector<8x512xf32>
    %c64_53 = arith.constant 64 : index
    %c0_54 = arith.constant 0 : index
    %110 = vector.load %arg9[%c64_53, %c0_54] : memref<72x512xf32, #tpu.memory_space<vmem>>, vector<8x512xf32>
    tpu.vector_store %arg9[%c64_53, %c0_54], %109 {strides = array<i32>} : memref<72x512xf32, #tpu.memory_space<vmem>>, vector<8x512xf32>,
    %c0_55 = arith.constant 0 : index
    %c0_56 = arith.constant 0 : index
    %111 = vector.load %arg9[%c0_55, %c0_56] : memref<72x512xf32, #tpu.memory_space<vmem>>, vector<72x512xf32>
    %cst_57 = arith.constant dense<0.000000e+00> : vector<8x512xf32>
    %112 = tpu.matmul %69, %111, %cst_57 {dimension_numbers = #tpu.dot_dimension_numbers<[1], [0], [0], [1], [0, 0, 1, 1], [], []>} : vector<8x72xf32>, vector<72x512xf32>, vector<8x512xf32> -> vector<8x512xf32>
    %c0_58 = arith.constant 0 : index
    %c0_59 = arith.constant 0 : index
    %113 = vector.load %arg6[%c0_58, %c0_59] : memref<8x1xf32, #tpu.memory_space<vmem>>, vector<8x1xf32>
    %c0_60 = arith.constant 0 : index
    %c0_61 = arith.constant 0 : index
    %114 = vector.load %arg7[%c0_60, %c0_61] : memref<8x1xf32, #tpu.memory_space<vmem>>, vector<8x1xf32>
    %cst_62 = arith.constant dense<0.000000e+00> : vector<8xf32>
    %115 = vector.multi_reduction <add>, %112, %cst_62 [1] : vector<8x512xf32> to vector<8xf32>
    %116 = vector.shape_cast %115 : vector<8xf32> to vector<8x1xf32>
    %cst_63 = arith.constant 0.001953125 : f32
    %117 = vector.broadcast %cst_63 : f32 to vector<8x1xf32>
    %118 = arith.mulf %116, %117 : vector<8x1xf32>
    %119 = vector.broadcast %118 : vector<8x1xf32> to vector<8x512xf32>
    %120 = arith.subf %112, %119 : vector<8x512xf32>
    %121 = arith.mulf %120, %120 : vector<8x512xf32>
    %cst_64 = arith.constant dense<0.000000e+00> : vector<8xf32>
    %122 = vector.multi_reduction <add>, %121, %cst_64 [1] : vector<8x512xf32> to vector<8xf32>
    %123 = vector.shape_cast %122 : vector<8xf32> to vector<8x1xf32>
    %cst_65 = arith.constant 0.001953125 : f32
    %124 = vector.broadcast %cst_65 : f32 to vector<8x1xf32>
    %125 = arith.mulf %123, %124 : vector<8x1xf32>
    %cst_66 = arith.constant 9.99999974E-6 : f32
    %126 = vector.broadcast %cst_66 : f32 to vector<8x1xf32>
    %127 = arith.addf %125, %126 : vector<8x1xf32>
    %128 = math.rsqrt %127 : vector<8x1xf32>
    %129 = arith.mulf %113, %128 : vector<8x1xf32>
    %130 = vector.broadcast %129 : vector<8x1xf32> to vector<8x512xf32>
    %131 = arith.mulf %120, %130 : vector<8x512xf32>
    %132 = vector.broadcast %114 : vector<8x1xf32> to vector<8x512xf32>
    %133 = arith.addf %131, %132 : vector<8x512xf32>
    %134 = arith.addf %133, %0 : vector<8x512xf32>
    %cst_67 = arith.constant 0.000000e+00 : f32
    %135 = vector.broadcast %cst_67 : f32 to vector<8x512xf32>
    %136 = arith.maximumf %134, %135 : vector<8x512xf32>
    %c0_68 = arith.constant 0 : index
    %c0_69 = arith.constant 0 : index
    %137 = vector.load %arg8[%c0_68, %c0_69] : memref<8x512xf32, #tpu.memory_space<vmem>>, vector<8x512xf32>
    tpu.vector_store %arg8[%c0_68, %c0_69], %136 {strides = array<i32>} : memref<8x512xf32, #tpu.memory_space<vmem>>, vector<8x512xf32>,
    return
  }
}

</mosaic_0001>

<llo_original>
// kernel: tpu_custom_call.1
$region0: #{tpu_custom_call.1}
  #allocation0 [shape = 'u32[]', space=smem, size = 0x4, offset = 0x4, fixed_abs, tag = 'smem constant byte address 0x4 - core index']
  #allocation1 [shape = 'u32[144,128]{1,0:T(1,128)}', space=vmem, size = 0x12000, scoped, tag = 'internal scratch']
  #allocation2 [shape = 'f32[72,512]{1,0:T(8,128)}', space=vmem, size = 0x24000, scoped, tag = 'scratch operand']
  %s0 = inlined_call_operand.vmem [shape: f32[8,512], index: 0, kind: input, shape index: {}]
  %s1 = inlined_call_operand.hbm [shape: f32[8,512], index: 1, kind: input, shape index: {}]
  %s2 = inlined_call_operand.hbm [shape: f32[8,72], index: 2, kind: input, shape index: {}]
  %s3 = inlined_call_operand.vmem [shape: f32[8,1], index: 3, kind: input, shape index: {}]
  %s4 = inlined_call_operand.vmem [shape: f32[8,1], index: 4, kind: input, shape index: {}]
  %s5 = inlined_call_operand.vmem [shape: f32[8,72], index: 5, kind: input, shape index: {}]
  %s6 = inlined_call_operand.vmem [shape: f32[8,1], index: 6, kind: input, shape index: {}]
  %s7 = inlined_call_operand.vmem [shape: f32[8,1], index: 7, kind: input, shape index: {}]
  %s8 = inlined_call_operand.hbm [shape: f32[8,512], index: 8, kind: output, shape index: {}]
  %s9 = sld [smem:[#allocation0]]
  $region50: #{tpu_custom_call.1} parent=0
    _
  %s11 = ssub.s32 1, %s9
  %s12 = scalar_select 0, %s11, %s9
  $region1: #{tpu_custom_call.1} parent=0
    #allocation3 [shape = 'u8[16384]{0}', space=vmem, size = 0x4000, scoped, tag = 'input window, operand 1, single buffered']
    #allocation4 [shape = 's32[1]{0}', space=sflag, size = 0x4, scoped, tag = 'scoped memory for tpu_custom_call.1']
    #allocation5 [shape = 's32[1]{0}', space=sflag, size = 0x4, scoped, tag = 'scoped memory for tpu_custom_call.1']
    #allocation6 [shape = 'u8[4096]{0}', space=vmem, size = 0x1000, scoped, tag = 'input window, operand 2, single buffered']
    #allocation7 [shape = 's32[1]{0}', space=sflag, size = 0x4, scoped, tag = 'scoped memory for tpu_custom_call.1']
    #allocation8 [shape = 'u8[16384]{0}', space=vmem, size = 0x4000, scoped, tag = 'output window, operand 0, single buffered']
    %13 = vsyncpa [#allocation4], 0
    %14 = vsyncpa [#allocation7], 0
    %15 = vsyncpa [#allocation5], 0
    // Predicated region
    $region2: #{tpu_custom_call.1} parent=1 // pred_check
      _
    $region3: #{tpu_custom_call.1} parent=1 // pred_check_branch
      %17 = sbr.rel (0) target = $region5
    $region4: #{tpu_custom_call.1} parent=1 // pred_region
      _
    $region5: #{tpu_custom_call.1} parent=1 // pred_fallthru
      _
    // Predicated region
    $region6: #{tpu_custom_call.1} parent=1 // pred_check
      _
    $region7: #{tpu_custom_call.1} parent=1 // pred_check_branch
      %19 = sbr.rel (0) target = $region9
    $region8: #{tpu_custom_call.1} parent=1 // pred_region
      %s21 = ssub.s32 512, 512
      %22 = vsyncadd [#allocation4], %s21
      %s24 = sshll.u32 [#allocation3], 4
      %s25 = int_to_ptr.vmem [resolvable:$true] %s24
      %27 = dma.hbm_to_vmem [thread:$0]  %s1, 512, %s25, [#allocation4]
    $region9: #{tpu_custom_call.1} parent=1 // pred_fallthru
      _
    // Predicated region
    $region10: #{tpu_custom_call.1} parent=1 // pred_check
      _
    $region11: #{tpu_custom_call.1} parent=1 // pred_check_branch
      %29 = sbr.rel (0) target = $region13
    $region12: #{tpu_custom_call.1} parent=1 // pred_region
      %s31 = ssub.s32 128, 128
      %32 = vsyncadd [#allocation7], %s31
      %s34 = sshll.u32 [#allocation6], 4
      %s35 = int_to_ptr.vmem [resolvable:$true] %s34
      %37 = dma.hbm_to_vmem [thread:$0]  %s2, 128, %s35, [#allocation7]
    $region13: #{tpu_custom_call.1} parent=1 // pred_fallthru
      _
    // Predicated region
    $region14: #{tpu_custom_call.1} parent=1 // pred_check
      _
    $region15: #{tpu_custom_call.1} parent=1 // pred_check_branch
      %39 = sbr.rel (0) target = $region17
    $region16: #{tpu_custom_call.1} parent=1 // pred_region
      _
    $region17: #{tpu_custom_call.1} parent=1 // pred_fallthru
      _
    // Predicated region
    $region18: #{tpu_custom_call.1} parent=1 // pred_check
      _
    $region19: #{tpu_custom_call.1} parent=1 // pred_check_branch
      %41 = sbr.rel (0) target = $region21
    $region20: #{tpu_custom_call.1} parent=1 // pred_region
      _
    $region21: #{tpu_custom_call.1} parent=1 // pred_fallthru
      _
    // Predicated region
    $region22: #{tpu_custom_call.1} parent=1 // pred_check
      _
    $region23: #{tpu_custom_call.1} parent=1 // pred_check_branch
      %43 = sbr.rel (0) target = $region25
    $region24: #{tpu_custom_call.1} parent=1 // pred_region
      _
    $region25: #{tpu_custom_call.1} parent=1 // pred_fallthru
      _
    // Predicated region
    $region26: #{tpu_custom_call.1} parent=1 // pred_check
      _
    $region27: #{tpu_custom_call.1} parent=1 // pred_check_branch
      %45 = sbr.rel (0) target = $region29
    $region28: #{tpu_custom_call.1} parent=1 // pred_region
      _
    $region29: #{tpu_custom_call.1} parent=1 // pred_fallthru
      _
    // Predicated region
    $region30: #{tpu_custom_call.1} parent=1 // pred_check
      _
    $region31: #{tpu_custom_call.1} parent=1 // pred_check_branch
      %47 = sbr.rel (0) target = $region33
    $region32: #{tpu_custom_call.1} parent=1 // pred_region
      _
    $region33: #{tpu_custom_call.1} parent=1 // pred_fallthru
      _
    // Predicated region
    $region34: #{tpu_custom_call.1} parent=1 // pred_check
      _
    $region35: #{tpu_custom_call.1} parent=1 // pred_check_branch
      %49 = sbr.rel (0) target = $region37
    $region36: #{tpu_custom_call.1} parent=1 // pred_region
      %50 = dma.done [#allocation4], 512
    $region37: #{tpu_custom_call.1} parent=1 // pred_fallthru
      _
    // Predicated region
    $region38: #{tpu_custom_call.1} parent=1 // pred_check
      _
    $region39: #{tpu_custom_call.1} parent=1 // pred_check_branch
      %52 = sbr.rel (0) target = $region41
    $region40: #{tpu_custom_call.1} parent=1 // pred_region
      %53 = dma.done [#allocation7], 128
    $region41: #{tpu_custom_call.1} parent=1 // pred_fallthru
      _
    %v54 = vld [vmem:[%s0] sm:$0xff]
    %v55 = vld [vmem:[%s0 + $0x8] sm:$0xff]
    %v56 = vld [vmem:[%s0 + $0x10] sm:$0xff]
    %v57 = vld [vmem:[%s0 + $0x18] sm:$0xff]
    %v58 = vld [vmem:[#allocation3] sm:$0xff]
    %v59 = vld [vmem:[#allocation3 + $0x8] sm:$0xff]
    %v60 = vld [vmem:[#allocation3 + $0x10] sm:$0xff]
    %v61 = vld [vmem:[#allocation3 + $0x18] sm:$0xff]
    %v62 = vld [vmem:[#allocation6] sm:$0xff]
    %63 = vrot.lane.b32.xlu0 %v54, 17
    %v64 = vpop.permute.xlu0 %63
    %65 = vrot.lane.b32.xlu0 %v55, 17
    %v66 = vpop.permute.xlu0 %65
    %67 = vrot.lane.b32.xlu0 %v56, 17
    %v68 = vpop.permute.xlu0 %67
    %69 = vrot.lane.b32.xlu0 %v57, 17
    %v70 = vpop.permute.xlu0 %69
    %v71 = vlaneseq
    %v72 = vand.u32 %v71, 127
    %vm73 = vcmp.lt.s32.totalorder %v72, 17
    %v74 = vsel %vm73, %v68, %v70
    %v75 = vsel %vm73, %v66, %v68
    %v76 = vsel %vm73, %v64, %v66
    %v77 = vsel %vm73, %v70, %v64
    %v78 = vlaneseq
    %v79 = vshrl.u32 %v78, 7
    %v80 = vsub.s32 0, %v79
    %v81 = vrot.slane %v58, %v80
    %v82 = vlaneseq
    %v83 = vshrl.u32 %v82, 7
    %v84 = vsub.s32 0, %v83
    %v85 = vrot.slane %v59, %v84
    %v86 = vlaneseq
    %v87 = vshrl.u32 %v86, 7
    %v88 = vsub.s32 0, %v87
    %v89 = vrot.slane %v60, %v88
    %v90 = vlaneseq
    %v91 = vshrl.u32 %v90, 7
    %v92 = vsub.s32 0, %v91
    %v93 = vrot.slane %v61, %v92
    %v94 = vmul.f32 %v77, %v81
    %v95 = vmul.f32 %v76, %v85
    %v96 = vmul.f32 %v75, %v89
    %v97 = vmul.f32 %v74, %v93
    %98 = vst [vmem:[#allocation2] sm:$0xff] %v94
    %99 = vst [vmem:[#allocation2 + $0x8] sm:$0xff] %v95
    %100 = vst [vmem:[#allocation2 + $0x10] sm:$0xff] %v96
    %101 = vst [vmem:[#allocation2 + $0x18] sm:$0xff] %v97
    %102 = vrot.lane.b32.xlu0 %v54, 16
    %v103 = vpop.permute.xlu0 %102
    %104 = vrot.lane.b32.xlu0 %v55, 16
    %v105 = vpop.permute.xlu0 %104
    %106 = vrot.lane.b32.xlu0 %v56, 16
    %v107 = vpop.permute.xlu0 %106
    %108 = vrot.lane.b32.xlu0 %v57, 16
    %v109 = vpop.permute.xlu0 %108
    %vm110 = vcmp.lt.s32.totalorder %v72, 16
    %v111 = vsel %vm110, %v107, %v109
    %v112 = vsel %vm110, %v105, %v107
    %v113 = vsel %vm110, %v103, %v105
    %v114 = vsel %vm110, %v109, %v103
    %v115 = vlaneseq
    %v116 = vshrl.u32 %v115, 7
    %v117 = vsub.s32 1, %v116
    %v118 = vrot.slane %v58, %v117
    %v119 = vlaneseq
    %v120 = vshrl.u32 %v119, 7
    %v121 = vsub.s32 1, %v120
    %v122 = vrot.slane %v59, %v121
    %v123 = vlaneseq
    %v124 = vshrl.u32 %v123, 7
    %v125 = vsub.s32 1, %v124
    %v126 = vrot.slane %v60, %v125
    %v127 = vlaneseq
    %v128 = vshrl.u32 %v127, 7
    %v129 = vsub.s32 1, %v128
    %v130 = vrot.slane %v61, %v129
    %v131 = vmul.f32 %v114, %v118
    %v132 = vmul.f32 %v113, %v122
    %v133 = vmul.f32 %v112, %v126
    %v134 = vmul.f32 %v111, %v130
    %135 = vst [vmem:[#allocation2 + $0x20] sm:$0xff] %v131
    %136 = vst [vmem:[#allocation2 + $0x28] sm:$0xff] %v132
    %137 = vst [vmem:[#allocation2 + $0x30] sm:$0xff] %v133
    %138 = vst [vmem:[#allocation2 + $0x38] sm:$0xff] %v134
    %139 = vrot.lane.b32.xlu0 %v54, 15
    %v140 = vpop.permute.xlu0 %139
    %141 = vrot.lane.b32.xlu0 %v55, 15
    %v142 = vpop.permute.xlu0 %141
    %143 = vrot.lane.b32.xlu0 %v56, 15
    %v144 = vpop.permute.xlu0 %143
    %145 = vrot.lane.b32.xlu0 %v57, 15
    %v146 = vpop.permute.xlu0 %145
    %vm147 = vcmp.lt.s32.totalorder %v72, 15
    %v148 = vsel %vm147, %v144, %v146
    %v149 = vsel %vm147, %v142, %v144
    %v150 = vsel %vm147, %v140, %v142
    %v151 = vsel %vm147, %v146, %v140
    %v152 = vlaneseq
    %v153 = vshrl.u32 %v152, 7
    %v154 = vsub.s32 2, %v153
    %v155 = vrot.slane %v58, %v154
    %v156 = vlaneseq
    %v157 = vshrl.u32 %v156, 7
    %v158 = vsub.s32 2, %v157
    %v159 = vrot.slane %v59, %v158
    %v160 = vlaneseq
    %v161 = vshrl.u32 %v160, 7
    %v162 = vsub.s32 2, %v161
    %v163 = vrot.slane %v60, %v162
    %v164 = vlaneseq
    %v165 = vshrl.u32 %v164, 7
    %v166 = vsub.s32 2, %v165
    %v167 = vrot.slane %v61, %v166
    %v168 = vmul.f32 %v151, %v155
    %v169 = vmul.f32 %v150, %v159
    %v170 = vmul.f32 %v149, %v163
    %v171 = vmul.f32 %v148, %v167
    %172 = vst [vmem:[#allocation2 + $0x40] sm:$0xff] %v168
    %173 = vst [vmem:[#allocation2 + $0x48] sm:$0xff] %v169
    %174 = vst [vmem:[#allocation2 + $0x50] sm:$0xff] %v170
    %175 = vst [vmem:[#allocation2 + $0x58] sm:$0xff] %v171
    %176 = vrot.lane.b32.xlu0 %v54, 1
    %v177 = vpop.permute.xlu0 %176
    %178 = vrot.lane.b32.xlu0 %v55, 1
    %v179 = vpop.permute.xlu0 %178
    %180 = vrot.lane.b32.xlu0 %v56, 1
    %v181 = vpop.permute.xlu0 %180
    %182 = vrot.lane.b32.xlu0 %v57, 1
    %v183 = vpop.permute.xlu0 %182
    %vm184 = vcmp.lt.s32.totalorder %v72, 1
    %v185 = vsel %vm184, %v181, %v183
    %v186 = vsel %vm184, %v179, %v181
    %v187 = vsel %vm184, %v177, %v179
    %v188 = vsel %vm184, %v183, %v177
    %v189 = vlaneseq
    %v190 = vshrl.u32 %v189, 7
    %v191 = vsub.s32 3, %v190
    %v192 = vrot.slane %v58, %v191
    %v193 = vlaneseq
    %v194 = vshrl.u32 %v193, 7
    %v195 = vsub.s32 3, %v194
    %v196 = vrot.slane %v59, %v195
    %v197 = vlaneseq
    %v198 = vshrl.u32 %v197, 7
    %v199 = vsub.s32 3, %v198
    %v200 = vrot.slane %v60, %v199
    %v201 = vlaneseq
    %v202 = vshrl.u32 %v201, 7
    %v203 = vsub.s32 3, %v202
    %v204 = vrot.slane %v61, %v203
    %v205 = vmul.f32 %v188, %v192
    %v206 = vmul.f32 %v187, %v196
    %v207 = vmul.f32 %v186, %v200
    %v208 = vmul.f32 %v185, %v204
    %209 = vst [vmem:[#allocation2 + $0x60] sm:$0xff] %v205
    %210 = vst [vmem:[#allocation2 + $0x68] sm:$0xff] %v206
    %211 = vst [vmem:[#allocation2 + $0x70] sm:$0xff] %v207
    %212 = vst [vmem:[#allocation2 + $0x78] sm:$0xff] %v208
    %213 = vst [vmem:[#allocation2 + $0x80] sm:$0xff] %v54
    %214 = vst [vmem:[#allocation2 + $0x88] sm:$0xff] %v55
    %215 = vst [vmem:[#allocation2 + $0x90] sm:$0xff] %v56
    %216 = vst [vmem:[#allocation2 + $0x98] sm:$0xff] %v57
    %217 = vrot.lane.b32.xlu0 %v54, 127
    %v218 = vpop.permute.xlu0 %217
    %219 = vrot.lane.b32.xlu0 %v55, 127
    %v220 = vpop.permute.xlu0 %219
    %221 = vrot.lane.b32.xlu0 %v56, 127
    %v222 = vpop.permute.xlu0 %221
    %223 = vrot.lane.b32.xlu0 %v57, 127
    %v224 = vpop.permute.xlu0 %223
    %vm225 = vcmp.lt.s32.totalorder %v72, 127
    %v226 = vsel %vm225, %v222, %v224
    %v227 = vsel %vm225, %v220, %v222
    %v228 = vsel %vm225, %v218, %v220
    %v229 = vsel %vm225, %v224, %v218
    %v230 = vlaneseq
    %v231 = vshrl.u32 %v230, 7
    %v232 = vsub.s32 4, %v231
    %v233 = vrot.slane %v58, %v232
    %v234 = vlaneseq
    %v235 = vshrl.u32 %v234, 7
    %v236 = vsub.s32 4, %v235
    %v237 = vrot.slane %v59, %v236
    %v238 = vlaneseq
    %v239 = vshrl.u32 %v238, 7
    %v240 = vsub.s32 4, %v239
    %v241 = vrot.slane %v60, %v240
    %v242 = vlaneseq
    %v243 = vshrl.u32 %v242, 7
    %v244 = vsub.s32 4, %v243
    %v245 = vrot.slane %v61, %v244
    %v246 = vmul.f32 %v228, %v233
    %v247 = vmul.f32 %v227, %v237
    %v248 = vmul.f32 %v226, %v241
    %v249 = vmul.f32 %v229, %v245
    %250 = vst [vmem:[#allocation2 + $0xa0] sm:$0xff] %v246
    %251 = vst [vmem:[#allocation2 + $0xa8] sm:$0xff] %v247
    %252 = vst [vmem:[#allocation2 + $0xb0] sm:$0xff] %v248
    %253 = vst [vmem:[#allocation2 + $0xb8] sm:$0xff] %v249
    %254 = vrot.lane.b32.xlu0 %v54, 113
    %v255 = vpop.permute.xlu0 %254
    %256 = vrot.lane.b32.xlu0 %v55, 113
    %v257 = vpop.permute.xlu0 %256
    %258 = vrot.lane.b32.xlu0 %v56, 113
    %v259 = vpop.permute.xlu0 %258
    %260 = vrot.lane.b32.xlu0 %v57, 113
    %v261 = vpop.permute.xlu0 %260
    %vm262 = vcmp.lt.s32.totalorder %v72, 113
    %v263 = vsel %vm262, %v259, %v261
    %v264 = vsel %vm262, %v257, %v259
    %v265 = vsel %vm262, %v255, %v257
    %v266 = vsel %vm262, %v261, %v255
    %v267 = vlaneseq
    %v268 = vshrl.u32 %v267, 7
    %v269 = vsub.s32 5, %v268
    %v270 = vrot.slane %v58, %v269
    %v271 = vlaneseq
    %v272 = vshrl.u32 %v271, 7
    %v273 = vsub.s32 5, %v272
    %v274 = vrot.slane %v59, %v273
    %v275 = vlaneseq
    %v276 = vshrl.u32 %v275, 7
    %v277 = vsub.s32 5, %v276
    %v278 = vrot.slane %v60, %v277
    %v279 = vlaneseq
    %v280 = vshrl.u32 %v279, 7
    %v281 = vsub.s32 5, %v280
    %v282 = vrot.slane %v61, %v281
    %v283 = vmul.f32 %v265, %v270
    %v284 = vmul.f32 %v264, %v274
    %v285 = vmul.f32 %v263, %v278
    %v286 = vmul.f32 %v266, %v282
    %287 = vst [vmem:[#allocation2 + $0xc0] sm:$0xff] %v283
    %288 = vst [vmem:[#allocation2 + $0xc8] sm:$0xff] %v284
    %289 = vst [vmem:[#allocation2 + $0xd0] sm:$0xff] %v285
    %290 = vst [vmem:[#allocation2 + $0xd8] sm:$0xff] %v286
    %291 = vrot.lane.b32.xlu0 %v54, 112
    %v292 = vpop.permute.xlu0 %291
    %293 = vrot.lane.b32.xlu0 %v55, 112
    %v294 = vpop.permute.xlu0 %293
    %295 = vrot.lane.b32.xlu0 %v56, 112
    %v296 = vpop.permute.xlu0 %295
    %297 = vrot.lane.b32.xlu0 %v57, 112
    %v298 = vpop.permute.xlu0 %297
    %vm299 = vcmp.lt.s32.totalorder %v72, 112
    %v300 = vsel %vm299, %v296, %v298
    %v301 = vsel %vm299, %v294, %v296
    %v302 = vsel %vm299, %v292, %v294
    %v303 = vsel %vm299, %v298, %v292
    %v304 = vlaneseq
    %v305 = vshrl.u32 %v304, 7
    %v306 = vsub.s32 6, %v305
    %v307 = vrot.slane %v58, %v306
    %v308 = vlaneseq
    %v309 = vshrl.u32 %v308, 7
    %v310 = vsub.s32 6, %v309
    %v311 = vrot.slane %v59, %v310
    %v312 = vlaneseq
    %v313 = vshrl.u32 %v312, 7
    %v314 = vsub.s32 6, %v313
    %v315 = vrot.slane %v60, %v314
    %v316 = vlaneseq
    %v317 = vshrl.u32 %v316, 7
    %v318 = vsub.s32 6, %v317
    %v319 = vrot.slane %v61, %v318
    %v320 = vmul.f32 %v302, %v307
    %v321 = vmul.f32 %v301, %v311
    %v322 = vmul.f32 %v300, %v315
    %v323 = vmul.f32 %v303, %v319
    %324 = vst [vmem:[#allocation2 + $0xe0] sm:$0xff] %v320
    %325 = vst [vmem:[#allocation2 + $0xe8] sm:$0xff] %v321
    %326 = vst [vmem:[#allocation2 + $0xf0] sm:$0xff] %v322
    %327 = vst [vmem:[#allocation2 + $0xf8] sm:$0xff] %v323
    %328 = vrot.lane.b32.xlu0 %v54, 111
    %v329 = vpop.permute.xlu0 %328
    %330 = vrot.lane.b32.xlu0 %v55, 111
    %v331 = vpop.permute.xlu0 %330
    %332 = vrot.lane.b32.xlu0 %v56, 111
    %v333 = vpop.permute.xlu0 %332
    %334 = vrot.lane.b32.xlu0 %v57, 111
    %v335 = vpop.permute.xlu0 %334
    %vm336 = vcmp.lt.s32.totalorder %v72, 111
    %v337 = vsel %vm336, %v333, %v335
    %v338 = vsel %vm336, %v331, %v333
    %v339 = vsel %vm336, %v329, %v331
    %v340 = vsel %vm336, %v335, %v329
    %v341 = vlaneseq
    %v342 = vshrl.u32 %v341, 7
    %v343 = vsub.s32 7, %v342
    %v344 = vrot.slane %v58, %v343
    %v345 = vlaneseq
    %v346 = vshrl.u32 %v345, 7
    %v347 = vsub.s32 7, %v346
    %v348 = vrot.slane %v59, %v347
    %v349 = vlaneseq
    %v350 = vshrl.u32 %v349, 7
    %v351 = vsub.s32 7, %v350
    %v352 = vrot.slane %v60, %v351
    %v353 = vlaneseq
    %v354 = vshrl.u32 %v353, 7
    %v355 = vsub.s32 7, %v354
    %v356 = vrot.slane %v61, %v355
    %v357 = vmul.f32 %v339, %v344
    %v358 = vmul.f32 %v338, %v348
    %v359 = vmul.f32 %v337, %v352
    %v360 = vmul.f32 %v340, %v356
    %361 = vst [vmem:[#allocation2 + $0x100] sm:$0xff] %v357
    %362 = vst [vmem:[#allocation2 + $0x108] sm:$0xff] %v358
    %363 = vst [vmem:[#allocation2 + $0x110] sm:$0xff] %v359
    %364 = vst [vmem:[#allocation2 + $0x118] sm:$0xff] %v360
    %v365 = vld [vmem:[#allocation2] sm:$0xff]
    %v366 = vld [vmem:[#allocation2 + $0x8] sm:$0xff]
    %v367 = vld [vmem:[#allocation2 + $0x10] sm:$0xff]
    %v368 = vld [vmem:[#allocation2 + $0x18] sm:$0xff]
    %v369 = vld [vmem:[#allocation2 + $0x20] sm:$0xff]
    %v370 = vld [vmem:[#allocation2 + $0x28] sm:$0xff]
    %v371 = vld [vmem:[#allocation2 + $0x30] sm:$0xff]
    %v372 = vld [vmem:[#allocation2 + $0x38] sm:$0xff]
    %v373 = vld [vmem:[#allocation2 + $0x40] sm:$0xff]
    %v374 = vld [vmem:[#allocation2 + $0x48] sm:$0xff]
    %v375 = vld [vmem:[#allocation2 + $0x50] sm:$0xff]
    %v376 = vld [vmem:[#allocation2 + $0x58] sm:$0xff]
    %v377 = vld [vmem:[#allocation2 + $0x60] sm:$0xff]
    %v378 = vld [vmem:[#allocation2 + $0x68] sm:$0xff]
    %v379 = vld [vmem:[#allocation2 + $0x70] sm:$0xff]
    %v380 = vld [vmem:[#allocation2 + $0x78] sm:$0xff]
    %v381 = vld [vmem:[#allocation2 + $0x80] sm:$0xff]
    %v382 = vld [vmem:[#allocation2 + $0x88] sm:$0xff]
    %v383 = vld [vmem:[#allocation2 + $0x90] sm:$0xff]
    %v384 = vld [vmem:[#allocation2 + $0x98] sm:$0xff]
    %v385 = vld [vmem:[#allocation2 + $0xa0] sm:$0xff]
    %v386 = vld [vmem:[#allocation2 + $0xa8] sm:$0xff]
    %v387 = vld [vmem:[#allocation2 + $0xb0] sm:$0xff]
    %v388 = vld [vmem:[#allocation2 + $0xb8] sm:$0xff]
    %v389 = vld [vmem:[#allocation2 + $0xc0] sm:$0xff]
    %v390 = vld [vmem:[#allocation2 + $0xc8] sm:$0xff]
    %v391 = vld [vmem:[#allocation2 + $0xd0] sm:$0xff]
    %v392 = vld [vmem:[#allocation2 + $0xd8] sm:$0xff]
    %v393 = vld [vmem:[#allocation2 + $0xe0] sm:$0xff]
    %v394 = vld [vmem:[#allocation2 + $0xe8] sm:$0xff]
    %v395 = vld [vmem:[#allocation2 + $0xf0] sm:$0xff]
    %v396 = vld [vmem:[#allocation2 + $0xf8] sm:$0xff]
    %v397 = vld [vmem:[#allocation2 + $0x100] sm:$0xff]
    %v398 = vld [vmem:[#allocation2 + $0x108] sm:$0xff]
    %v399 = vld [vmem:[#allocation2 + $0x110] sm:$0xff]
    %v400 = vld [vmem:[#allocation2 + $0x118] sm:$0xff]
    %vm401 = vcmask 588800
    %v403 = vsel %vm401, %v62, 0
    %405 = vmatprep.subr.mxu0 0.0
    %406 = vmatpush1.msra.mxu0 0.0
    %407 = vmatprep.subr.mxu0 0.0
    %408 = vmatpush1.msra.mxu0 0.0
    %409 = vmatprep.subr.mxu0 0.0
    %410 = vmatpush1.msra.mxu0 0.0
    %411 = vmatprep.subr.mxu0 0.0
    %412 = vmatpush1.msra.mxu0 0.0
    %413 = vmatprep.subr.mxu0 0.0
    %414 = vmatpush1.msra.mxu0 0.0
    %415 = vmatprep.subr.mxu0 0.0
    %416 = vmatpush1.msra.mxu0 0.0
    %417 = vmatprep.subr.mxu0 0.0
    %418 = vmatpush1.msra.mxu0 0.0
    %419 = vmatprep.subr.mxu0 %v398
    %420 = vmatpush1.msra.mxu0 %v397
    %421 = vmatprep.subr.mxu0 %v394
    %422 = vmatpush1.msra.mxu0 %v393
    %423 = vmatprep.subr.mxu0 %v390
    %424 = vmatpush1.msra.mxu0 %v389
    %425 = vmatprep.subr.mxu0 %v386
    %426 = vmatpush1.msra.mxu0 %v385
    %427 = vmatprep.subr.mxu0 %v382
    %428 = vmatpush1.msra.mxu0 %v381
    %429 = vmatprep.subr.mxu0 %v378
    %430 = vmatpush1.msra.mxu0 %v377
    %431 = vmatprep.subr.mxu0 %v374
    %432 = vmatpush1.msra.mxu0 %v373
    %433 = vmatprep.subr.mxu0 %v370
    %434 = vmatpush1.msra.mxu0 %v369
    %435 = vmatprep.subr.mxu0 %v366
    %436 = vmatpush1.msra.mxu0 %v365
    %437 = vmatprep.subr.mxu0 0.0
    %438 = vmatpush2.msra.mxu0 0.0
    %439 = vmatprep.subr.mxu0 0.0
    %440 = vmatpush2.msra.mxu0 0.0
    %441 = vmatprep.subr.mxu0 0.0
    %442 = vmatpush2.msra.mxu0 0.0
    %443 = vmatprep.subr.mxu0 0.0
    %444 = vmatpush2.msra.mxu0 0.0
    %445 = vmatprep.subr.mxu0 0.0
    %446 = vmatpush2.msra.mxu0 0.0
    %447 = vmatprep.subr.mxu0 0.0
    %448 = vmatpush2.msra.mxu0 0.0
    %449 = vmatprep.subr.mxu0 0.0
    %450 = vmatpush2.msra.mxu0 0.0
    %451 = vmatprep.subr.mxu0 0.0
    %452 = vmatpush2.msra.mxu0 0.0
    %453 = vmatprep.subr.mxu0 0.0
    %454 = vmatpush2.msra.mxu0 0.0
    %455 = vmatprep.subr.mxu0 0.0
    %456 = vmatpush2.msra.mxu0 0.0
    %457 = vmatprep.subr.mxu0 0.0
    %458 = vmatpush2.msra.mxu0 0.0
    %459 = vmatprep.subr.mxu0 0.0
    %460 = vmatpush2.msra.mxu0 0.0
    %461 = vmatprep.subr.mxu0 0.0
    %462 = vmatpush2.msra.mxu0 0.0
    %463 = vmatprep.subr.mxu0 0.0
    %464 = vmatpush2.msra.mxu0 0.0
    %465 = vmatprep.subr.mxu0 0.0
    %466 = vmatpush2.msra.mxu0 0.0
    %467 = vmatprep.subr.mxu0 0.0
    %468 = vmatpush2.msra.mxu0 0.0
    %469 = vmatprep.mubr.f32.mxu0 0.0
    %470 = vmatmul.mubr.f32.gmra.mxu0 %v403
    %v471 = vpop.f32.mrf.mxu0
    %v472 = vadd.f32 0.0, %v471
    %v473 = vpop.f32.mrf.mxu0
    %v474 = vadd.f32 0.0, %v473
    %475 = vdwg.mxu0
    %476 = vmatprep.subr.mxu0 0.0
    %477 = vmatpush1.msra.mxu0 0.0
    %478 = vmatprep.subr.mxu0 0.0
    %479 = vmatpush1.msra.mxu0 0.0
    %480 = vmatprep.subr.mxu0 0.0
    %481 = vmatpush1.msra.mxu0 0.0
    %482 = vmatprep.subr.mxu0 0.0
    %483 = vmatpush1.msra.mxu0 0.0
    %484 = vmatprep.subr.mxu0 0.0
    %485 = vmatpush1.msra.mxu0 0.0
    %486 = vmatprep.subr.mxu0 0.0
    %487 = vmatpush1.msra.mxu0 0.0
    %488 = vmatprep.subr.mxu0 0.0
    %489 = vmatpush1.msra.mxu0 0.0
    %490 = vmatprep.subr.mxu0 %v400
    %491 = vmatpush1.msra.mxu0 %v399
    %492 = vmatprep.subr.mxu0 %v396
    %493 = vmatpush1.msra.mxu0 %v395
    %494 = vmatprep.subr.mxu0 %v392
    %495 = vmatpush1.msra.mxu0 %v391
    %496 = vmatprep.subr.mxu0 %v388
    %497 = vmatpush1.msra.mxu0 %v387
    %498 = vmatprep.subr.mxu0 %v384
    %499 = vmatpush1.msra.mxu0 %v383
    %500 = vmatprep.subr.mxu0 %v380
    %501 = vmatpush1.msra.mxu0 %v379
    %502 = vmatprep.subr.mxu0 %v376
    %503 = vmatpush1.msra.mxu0 %v375
    %504 = vmatprep.subr.mxu0 %v372
    %505 = vmatpush1.msra.mxu0 %v371
    %506 = vmatprep.subr.mxu0 %v368
    %507 = vmatpush1.msra.mxu0 %v367
    %508 = vmatprep.subr.mxu0 0.0
    %509 = vmatpush2.msra.mxu0 0.0
    %510 = vmatprep.subr.mxu0 0.0
    %511 = vmatpush2.msra.mxu0 0.0
    %512 = vmatprep.subr.mxu0 0.0
    %513 = vmatpush2.msra.mxu0 0.0
    %514 = vmatprep.subr.mxu0 0.0
    %515 = vmatpush2.msra.mxu0 0.0
    %516 = vmatprep.subr.mxu0 0.0
    %517 = vmatpush2.msra.mxu0 0.0
    %518 = vmatprep.subr.mxu0 0.0
    %519 = vmatpush2.msra.mxu0 0.0
    %520 = vmatprep.subr.mxu0 0.0
    %521 = vmatpush2.msra.mxu0 0.0
    %522 = vmatprep.subr.mxu0 0.0
    %523 = vmatpush2.msra.mxu0 0.0
    %524 = vmatprep.subr.mxu0 0.0
    %525 = vmatpush2.msra.mxu0 0.0
    %526 = vmatprep.subr.mxu0 0.0
    %527 = vmatpush2.msra.mxu0 0.0
    %528 = vmatprep.subr.mxu0 0.0
    %529 = vmatpush2.msra.mxu0 0.0
    %530 = vmatprep.subr.mxu0 0.0
    %531 = vmatpush2.msra.mxu0 0.0
    %532 = vmatprep.subr.mxu0 0.0
    %533 = vmatpush2.msra.mxu0 0.0
    %534 = vmatprep.subr.mxu0 0.0
    %535 = vmatpush2.msra.mxu0 0.0
    %536 = vmatprep.subr.mxu0 0.0
    %537 = vmatpush2.msra.mxu0 0.0
    %538 = vmatprep.subr.mxu0 0.0
    %539 = vmatpush2.msra.mxu0 0.0
    %540 = vmatprep.mubr.f32.mxu0 0.0
    %541 = vmatmul.mubr.f32.gmra.mxu0 %v403
    %v542 = vpop.f32.mrf.mxu0
    %v543 = vadd.f32 0.0, %v542
    %v544 = vpop.f32.mrf.mxu0
    %v545 = vadd.f32 0.0, %v544
    %546 = vdwg.mxu0
    %v547 = vld [vmem:[%s3] sm:$0xff]
    %v548 = vld [vmem:[%s4] sm:$0xff]
    %v549 = vadd.f32 %v472, %v474
    %v550 = vadd.f32 %v549, %v543
    %v551 = vadd.f32 %v550, %v545
    %552 = vadd.xlane.f32.xlu0 %v551
    %v553 = vpop.xlane.xlu0 %552
    %v554 = vmul.f32 %v553, 0.001953125
    %v555 = vsub.f32 %v472, %v554
    %v556 = vsub.f32 %v474, %v554
    %v557 = vsub.f32 %v543, %v554
    %v558 = vsub.f32 %v545, %v554
    %v559 = vmul.f32 %v555, %v555
    %v560 = vmul.f32 %v556, %v556
    %v561 = vmul.f32 %v557, %v557
    %v562 = vmul.f32 %v558, %v558
    %v563 = vadd.f32 %v559, %v560
    %v564 = vadd.f32 %v563, %v561
    %v565 = vadd.f32 %v564, %v562
    %566 = vadd.xlane.f32.xlu0 %v565
    %v567 = vpop.xlane.xlu0 %566
    %v568 = vmul.f32 %v567, 0.001953125
    %v569 = vadd.f32 %v568, 1e-05
    %v570 = vrsqrt.pop %v569
    %v571 = vmul.f32 %v547, %v570
    %573 = vset.pattern.permute.xlu0 0
    %574 = vperm.xlu0 %573, %v571
    %v575 = vpop.permute.xlu0 %574
    %v577 = vmul.f32 %v555, %v575
    %v578 = vmul.f32 %v556, %v575
    %v579 = vmul.f32 %v557, %v575
    %v580 = vmul.f32 %v558, %v575
    %582 = vset.pattern.permute.xlu0 0
    %583 = vperm.xlu0 %582, %v548
    %v584 = vpop.permute.xlu0 %583
    %v586 = vadd.f32 %v577, %v584
    %v587 = vadd.f32 %v578, %v584
    %v588 = vadd.f32 %v579, %v584
    %v589 = vadd.f32 %v580, %v584
    %v590 = vmax.f32 %v586, 0.0
    %v591 = vmax.f32 %v587, 0.0
    %v592 = vmax.f32 %v588, 0.0
    %v593 = vmax.f32 %v589, 0.0
    %v594 = vld [vmem:[%s5] sm:$0xff]
    %595 = vrot.lane.b32.xlu0 %v590, 17
    %v596 = vpop.permute.xlu0 %595
    %597 = vrot.lane.b32.xlu0 %v591, 17
    %v598 = vpop.permute.xlu0 %597
    %599 = vrot.lane.b32.xlu0 %v592, 17
    %v600 = vpop.permute.xlu0 %599
    %601 = vrot.lane.b32.xlu0 %v593, 17
    %v602 = vpop.permute.xlu0 %601
    %v603 = vsel %vm73, %v600, %v602
    %v604 = vsel %vm73, %v598, %v600
    %v605 = vsel %vm73, %v596, %v598
    %v606 = vsel %vm73, %v602, %v596
    %v607 = vmul.f32 %v606, %v81
    %v608 = vmul.f32 %v605, %v85
    %v609 = vmul.f32 %v604, %v89
    %v610 = vmul.f32 %v603, %v93
    %611 = vst [vmem:[#allocation2] sm:$0xff] %v607
    %612 = vst [vmem:[#allocation2 + $0x8] sm:$0xff] %v608
    %613 = vst [vmem:[#allocation2 + $0x10] sm:$0xff] %v609
    %614 = vst [vmem:[#allocation2 + $0x18] sm:$0xff] %v610
    %615 = vrot.lane.b32.xlu0 %v590, 16
    %v616 = vpop.permute.xlu0 %615
    %617 = vrot.lane.b32.xlu0 %v591, 16
    %v618 = vpop.permute.xlu0 %617
    %619 = vrot.lane.b32.xlu0 %v592, 16
    %v620 = vpop.permute.xlu0 %619
    %621 = vrot.lane.b32.xlu0 %v593, 16
    %v622 = vpop.permute.xlu0 %621
    %v623 = vsel %vm110, %v620, %v622
    %v624 = vsel %vm110, %v618, %v620
    %v625 = vsel %vm110, %v616, %v618
    %v626 = vsel %vm110, %v622, %v616
    %v627 = vmul.f32 %v626, %v118
    %v628 = vmul.f32 %v625, %v122
    %v629 = vmul.f32 %v624, %v126
    %v630 = vmul.f32 %v623, %v130
    %631 = vst [vmem:[#allocation2 + $0x20] sm:$0xff] %v627
    %632 = vst [vmem:[#allocation2 + $0x28] sm:$0xff] %v628
    %633 = vst [vmem:[#allocation2 + $0x30] sm:$0xff] %v629
    %634 = vst [vmem:[#allocation2 + $0x38] sm:$0xff] %v630
    %635 = vrot.lane.b32.xlu0 %v590, 15
    %v636 = vpop.permute.xlu0 %635
    %637 = vrot.lane.b32.xlu0 %v591, 15
    %v638 = vpop.permute.xlu0 %637
    %639 = vrot.lane.b32.xlu0 %v592, 15
    %v640 = vpop.permute.xlu0 %639
    %641 = vrot.lane.b32.xlu0 %v593, 15
    %v642 = vpop.permute.xlu0 %641
    %v643 = vsel %vm147, %v640, %v642
    %v644 = vsel %vm147, %v638, %v640
    %v645 = vsel %vm147, %v636, %v638
    %v646 = vsel %vm147, %v642, %v636
    %v647 = vmul.f32 %v646, %v155
    %v648 = vmul.f32 %v645, %v159
    %v649 = vmul.f32 %v644, %v163
    %v650 = vmul.f32 %v643, %v167
    %651 = vst [vmem:[#allocation2 + $0x40] sm:$0xff] %v647
    %652 = vst [vmem:[#allocation2 + $0x48] sm:$0xff] %v648
    %653 = vst [vmem:[#allocation2 + $0x50] sm:$0xff] %v649
    %654 = vst [vmem:[#allocation2 + $0x58] sm:$0xff] %v650
    %655 = vrot.lane.b32.xlu0 %v590, 1
    %v656 = vpop.permute.xlu0 %655
    %657 = vrot.lane.b32.xlu0 %v591, 1
    %v658 = vpop.permute.xlu0 %657
    %659 = vrot.lane.b32.xlu0 %v592, 1
    %v660 = vpop.permute.xlu0 %659
    %661 = vrot.lane.b32.xlu0 %v593, 1
    %v662 = vpop.permute.xlu0 %661
    %v663 = vsel %vm184, %v660, %v662
    %v664 = vsel %vm184, %v658, %v660
    %v665 = vsel %vm184, %v656, %v658
    %v666 = vsel %vm184, %v662, %v656
    %v667 = vmul.f32 %v666, %v192
    %v668 = vmul.f32 %v665, %v196
    %v669 = vmul.f32 %v664, %v200
    %v670 = vmul.f32 %v663, %v204
    %671 = vst [vmem:[#allocation2 + $0x60] sm:$0xff] %v667
    %672 = vst [vmem:[#allocation2 + $0x68] sm:$0xff] %v668
    %673 = vst [vmem:[#allocation2 + $0x70] sm:$0xff] %v669
    %674 = vst [vmem:[#allocation2 + $0x78] sm:$0xff] %v670
    %675 = vst [vmem:[#allocation2 + $0x80] sm:$0xff] %v590
    %676 = vst [vmem:[#allocation2 + $0x88] sm:$0xff] %v591
    %677 = vst [vmem:[#allocation2 + $0x90] sm:$0xff] %v592
    %678 = vst [vmem:[#allocation2 + $0x98] sm:$0xff] %v593
    %679 = vrot.lane.b32.xlu0 %v590, 127
    %v680 = vpop.permute.xlu0 %679
    %681 = vrot.lane.b32.xlu0 %v591, 127
    %v682 = vpop.permute.xlu0 %681
    %683 = vrot.lane.b32.xlu0 %v592, 127
    %v684 = vpop.permute.xlu0 %683
    %685 = vrot.lane.b32.xlu0 %v593, 127
    %v686 = vpop.permute.xlu0 %685
    %v687 = vsel %vm225, %v684, %v686
    %v688 = vsel %vm225, %v682, %v684
    %v689 = vsel %vm225, %v680, %v682
    %v690 = vsel %vm225, %v686, %v680
    %v691 = vmul.f32 %v689, %v233
    %v692 = vmul.f32 %v688, %v237
    %v693 = vmul.f32 %v687, %v241
    %v694 = vmul.f32 %v690, %v245
    %695 = vst [vmem:[#allocation2 + $0xa0] sm:$0xff] %v691
    %696 = vst [vmem:[#allocation2 + $0xa8] sm:$0xff] %v692
    %697 = vst [vmem:[#allocation2 + $0xb0] sm:$0xff] %v693
    %698 = vst [vmem:[#allocation2 + $0xb8] sm:$0xff] %v694
    %699 = vrot.lane.b32.xlu0 %v590, 113
    %v700 = vpop.permute.xlu0 %699
    %701 = vrot.lane.b32.xlu0 %v591, 113
    %v702 = vpop.permute.xlu0 %701
    %703 = vrot.lane.b32.xlu0 %v592, 113
    %v704 = vpop.permute.xlu0 %703
    %705 = vrot.lane.b32.xlu0 %v593, 113
    %v706 = vpop.permute.xlu0 %705
    %v707 = vsel %vm262, %v704, %v706
    %v708 = vsel %vm262, %v702, %v704
    %v709 = vsel %vm262, %v700, %v702
    %v710 = vsel %vm262, %v706, %v700
    %v711 = vmul.f32 %v709, %v270
    %v712 = vmul.f32 %v708, %v274
    %v713 = vmul.f32 %v707, %v278
    %v714 = vmul.f32 %v710, %v282
    %715 = vst [vmem:[#allocation2 + $0xc0] sm:$0xff] %v711
    %716 = vst [vmem:[#allocation2 + $0xc8] sm:$0xff] %v712
    %717 = vst [vmem:[#allocation2 + $0xd0] sm:$0xff] %v713
    %718 = vst [vmem:[#allocation2 + $0xd8] sm:$0xff] %v714
    %719 = vrot.lane.b32.xlu0 %v590, 112
    %v720 = vpop.permute.xlu0 %719
    %721 = vrot.lane.b32.xlu0 %v591, 112
    %v722 = vpop.permute.xlu0 %721
    %723 = vrot.lane.b32.xlu0 %v592, 112
    %v724 = vpop.permute.xlu0 %723
    %725 = vrot.lane.b32.xlu0 %v593, 112
    %v726 = vpop.permute.xlu0 %725
    %v727 = vsel %vm299, %v724, %v726
    %v728 = vsel %vm299, %v722, %v724
    %v729 = vsel %vm299, %v720, %v722
    %v730 = vsel %vm299, %v726, %v720
    %v731 = vmul.f32 %v729, %v307
    %v732 = vmul.f32 %v728, %v311
    %v733 = vmul.f32 %v727, %v315
    %v734 = vmul.f32 %v730, %v319
    %735 = vst [vmem:[#allocation2 + $0xe0] sm:$0xff] %v731
    %736 = vst [vmem:[#allocation2 + $0xe8] sm:$0xff] %v732
    %737 = vst [vmem:[#allocation2 + $0xf0] sm:$0xff] %v733
    %738 = vst [vmem:[#allocation2 + $0xf8] sm:$0xff] %v734
    %739 = vrot.lane.b32.xlu0 %v590, 111
    %v740 = vpop.permute.xlu0 %739
    %741 = vrot.lane.b32.xlu0 %v591, 111
    %v742 = vpop.permute.xlu0 %741
    %743 = vrot.lane.b32.xlu0 %v592, 111
    %v744 = vpop.permute.xlu0 %743
    %745 = vrot.lane.b32.xlu0 %v593, 111
    %v746 = vpop.permute.xlu0 %745
    %v747 = vsel %vm336, %v744, %v746
    %v748 = vsel %vm336, %v742, %v744
    %v749 = vsel %vm336, %v740, %v742
    %v750 = vsel %vm336, %v746, %v740
    %v751 = vmul.f32 %v749, %v344
    %v752 = vmul.f32 %v748, %v348
    %v753 = vmul.f32 %v747, %v352
    %v754 = vmul.f32 %v750, %v356
    %755 = vst [vmem:[#allocation2 + $0x100] sm:$0xff] %v751
    %756 = vst [vmem:[#allocation2 + $0x108] sm:$0xff] %v752
    %757 = vst [vmem:[#allocation2 + $0x110] sm:$0xff] %v753
    %758 = vst [vmem:[#allocation2 + $0x118] sm:$0xff] %v754
    %v759 = vld [vmem:[#allocation2] sm:$0xff]
    %v760 = vld [vmem:[#allocation2 + $0x8] sm:$0xff]
    %v761 = vld [vmem:[#allocation2 + $0x10] sm:$0xff]
    %v762 = vld [vmem:[#allocation2 + $0x18] sm:$0xff]
    %v763 = vld [vmem:[#allocation2 + $0x20] sm:$0xff]
    %v764 = vld [vmem:[#allocation2 + $0x28] sm:$0xff]
    %v765 = vld [vmem:[#allocation2 + $0x30] sm:$0xff]
    %v766 = vld [vmem:[#allocation2 + $0x38] sm:$0xff]
    %v767 = vld [vmem:[#allocation2 + $0x40] sm:$0xff]
    %v768 = vld [vmem:[#allocation2 + $0x48] sm:$0xff]
    %v769 = vld [vmem:[#allocation2 + $0x50] sm:$0xff]
    %v770 = vld [vmem:[#allocation2 + $0x58] sm:$0xff]
    %v771 = vld [vmem:[#allocation2 + $0x60] sm:$0xff]
    %v772 = vld [vmem:[#allocation2 + $0x68] sm:$0xff]
    %v773 = vld [vmem:[#allocation2 + $0x70] sm:$0xff]
    %v774 = vld [vmem:[#allocation2 + $0x78] sm:$0xff]
    %v775 = vld [vmem:[#allocation2 + $0x80] sm:$0xff]
    %v776 = vld [vmem:[#allocation2 + $0x88] sm:$0xff]
    %v777 = vld [vmem:[#allocation2 + $0x90] sm:$0xff]
    %v778 = vld [vmem:[#allocation2 + $0x98] sm:$0xff]
    %v779 = vld [vmem:[#allocation2 + $0xa0] sm:$0xff]
    %v780 = vld [vmem:[#allocation2 + $0xa8] sm:$0xff]
    %v781 = vld [vmem:[#allocation2 + $0xb0] sm:$0xff]
    %v782 = vld [vmem:[#allocation2 + $0xb8] sm:$0xff]
    %v783 = vld [vmem:[#allocation2 + $0xc0] sm:$0xff]
    %v784 = vld [vmem:[#allocation2 + $0xc8] sm:$0xff]
    %v785 = vld [vmem:[#allocation2 + $0xd0] sm:$0xff]
    %v786 = vld [vmem:[#allocation2 + $0xd8] sm:$0xff]
    %v787 = vld [vmem:[#allocation2 + $0xe0] sm:$0xff]
    %v788 = vld [vmem:[#allocation2 + $0xe8] sm:$0xff]
    %v789 = vld [vmem:[#allocation2 + $0xf0] sm:$0xff]
    %v790 = vld [vmem:[#allocation2 + $0xf8] sm:$0xff]
    %v791 = vld [vmem:[#allocation2 + $0x100] sm:$0xff]
    %v792 = vld [vmem:[#allocation2 + $0x108] sm:$0xff]
    %v793 = vld [vmem:[#allocation2 + $0x110] sm:$0xff]
    %v794 = vld [vmem:[#allocation2 + $0x118] sm:$0xff]
    %v796 = vsel %vm401, %v594, 0
    %798 = vmatprep.subr.mxu0 0.0
    %799 = vmatpush1.msra.mxu0 0.0
    %800 = vmatprep.subr.mxu0 0.0
    %801 = vmatpush1.msra.mxu0 0.0
    %802 = vmatprep.subr.mxu0 0.0
    %803 = vmatpush1.msra.mxu0 0.0
    %804 = vmatprep.subr.mxu0 0.0
    %805 = vmatpush1.msra.mxu0 0.0
    %806 = vmatprep.subr.mxu0 0.0
    %807 = vmatpush1.msra.mxu0 0.0
    %808 = vmatprep.subr.mxu0 0.0
    %809 = vmatpush1.msra.mxu0 0.0
    %810 = vmatprep.subr.mxu0 0.0
    %811 = vmatpush1.msra.mxu0 0.0
    %812 = vmatprep.subr.mxu0 %v792
    %813 = vmatpush1.msra.mxu0 %v791
    %814 = vmatprep.subr.mxu0 %v788
    %815 = vmatpush1.msra.mxu0 %v787
    %816 = vmatprep.subr.mxu0 %v784
    %817 = vmatpush1.msra.mxu0 %v783
    %818 = vmatprep.subr.mxu0 %v780
    %819 = vmatpush1.msra.mxu0 %v779
    %820 = vmatprep.subr.mxu0 %v776
    %821 = vmatpush1.msra.mxu0 %v775
    %822 = vmatprep.subr.mxu0 %v772
    %823 = vmatpush1.msra.mxu0 %v771
    %824 = vmatprep.subr.mxu0 %v768
    %825 = vmatpush1.msra.mxu0 %v767
    %826 = vmatprep.subr.mxu0 %v764
    %827 = vmatpush1.msra.mxu0 %v763
    %828 = vmatprep.subr.mxu0 %v760
    %829 = vmatpush1.msra.mxu0 %v759
    %830 = vmatprep.subr.mxu0 0.0
    %831 = vmatpush2.msra.mxu0 0.0
    %832 = vmatprep.subr.mxu0 0.0
    %833 = vmatpush2.msra.mxu0 0.0
    %834 = vmatprep.subr.mxu0 0.0
    %835 = vmatpush2.msra.mxu0 0.0
    %836 = vmatprep.subr.mxu0 0.0
    %837 = vmatpush2.msra.mxu0 0.0
    %838 = vmatprep.subr.mxu0 0.0
    %839 = vmatpush2.msra.mxu0 0.0
    %840 = vmatprep.subr.mxu0 0.0
    %841 = vmatpush2.msra.mxu0 0.0
    %842 = vmatprep.subr.mxu0 0.0
    %843 = vmatpush2.msra.mxu0 0.0
    %844 = vmatprep.subr.mxu0 0.0
    %845 = vmatpush2.msra.mxu0 0.0
    %846 = vmatprep.subr.mxu0 0.0
    %847 = vmatpush2.msra.mxu0 0.0
    %848 = vmatprep.subr.mxu0 0.0
    %849 = vmatpush2.msra.mxu0 0.0
    %850 = vmatprep.subr.mxu0 0.0
    %851 = vmatpush2.msra.mxu0 0.0
    %852 = vmatprep.subr.mxu0 0.0
    %853 = vmatpush2.msra.mxu0 0.0
    %854 = vmatprep.subr.mxu0 0.0
    %855 = vmatpush2.msra.mxu0 0.0
    %856 = vmatprep.subr.mxu0 0.0
    %857 = vmatpush2.msra.mxu0 0.0
    %858 = vmatprep.subr.mxu0 0.0
    %859 = vmatpush2.msra.mxu0 0.0
    %860 = vmatprep.subr.mxu0 0.0
    %861 = vmatpush2.msra.mxu0 0.0
    %862 = vmatprep.mubr.f32.mxu0 0.0
    %863 = vmatmul.mubr.f32.gmra.mxu0 %v796
    %v864 = vpop.f32.mrf.mxu0
    %v865 = vadd.f32 0.0, %v864
    %v866 = vpop.f32.mrf.mxu0
    %v867 = vadd.f32 0.0, %v866
    %868 = vdwg.mxu0
    %869 = vmatprep.subr.mxu0 0.0
    %870 = vmatpush1.msra.mxu0 0.0
    %871 = vmatprep.subr.mxu0 0.0
    %872 = vmatpush1.msra.mxu0 0.0
    %873 = vmatprep.subr.mxu0 0.0
    %874 = vmatpush1.msra.mxu0 0.0
    %875 = vmatprep.subr.mxu0 0.0
    %876 = vmatpush1.msra.mxu0 0.0
    %877 = vmatprep.subr.mxu0 0.0
    %878 = vmatpush1.msra.mxu0 0.0
    %879 = vmatprep.subr.mxu0 0.0
    %880 = vmatpush1.msra.mxu0 0.0
    %881 = vmatprep.subr.mxu0 0.0
    %882 = vmatpush1.msra.mxu0 0.0
    %883 = vmatprep.subr.mxu0 %v794
    %884 = vmatpush1.msra.mxu0 %v793
    %885 = vmatprep.subr.mxu0 %v790
    %886 = vmatpush1.msra.mxu0 %v789
    %887 = vmatprep.subr.mxu0 %v786
    %888 = vmatpush1.msra.mxu0 %v785
    %889 = vmatprep.subr.mxu0 %v782
    %890 = vmatpush1.msra.mxu0 %v781
    %891 = vmatprep.subr.mxu0 %v778
    %892 = vmatpush1.msra.mxu0 %v777
    %893 = vmatprep.subr.mxu0 %v774
    %894 = vmatpush1.msra.mxu0 %v773
    %895 = vmatprep.subr.mxu0 %v770
    %896 = vmatpush1.msra.mxu0 %v769
    %897 = vmatprep.subr.mxu0 %v766
    %898 = vmatpush1.msra.mxu0 %v765
    %899 = vmatprep.subr.mxu0 %v762
    %900 = vmatpush1.msra.mxu0 %v761
    %901 = vmatprep.subr.mxu0 0.0
    %902 = vmatpush2.msra.mxu0 0.0
    %903 = vmatprep.subr.mxu0 0.0
    %904 = vmatpush2.msra.mxu0 0.0
    %905 = vmatprep.subr.mxu0 0.0
    %906 = vmatpush2.msra.mxu0 0.0
    %907 = vmatprep.subr.mxu0 0.0
    %908 = vmatpush2.msra.mxu0 0.0
    %909 = vmatprep.subr.mxu0 0.0
    %910 = vmatpush2.msra.mxu0 0.0
    %911 = vmatprep.subr.mxu0 0.0
    %912 = vmatpush2.msra.mxu0 0.0
    %913 = vmatprep.subr.mxu0 0.0
    %914 = vmatpush2.msra.mxu0 0.0
    %915 = vmatprep.subr.mxu0 0.0
    %916 = vmatpush2.msra.mxu0 0.0
    %917 = vmatprep.subr.mxu0 0.0
    %918 = vmatpush2.msra.mxu0 0.0
    %919 = vmatprep.subr.mxu0 0.0
    %920 = vmatpush2.msra.mxu0 0.0
    %921 = vmatprep.subr.mxu0 0.0
    %922 = vmatpush2.msra.mxu0 0.0
    %923 = vmatprep.subr.mxu0 0.0
    %924 = vmatpush2.msra.mxu0 0.0
    %925 = vmatprep.subr.mxu0 0.0
    %926 = vmatpush2.msra.mxu0 0.0
    %927 = vmatprep.subr.mxu0 0.0
    %928 = vmatpush2.msra.mxu0 0.0
    %929 = vmatprep.subr.mxu0 0.0
    %930 = vmatpush2.msra.mxu0 0.0
    %931 = vmatprep.subr.mxu0 0.0
    %932 = vmatpush2.msra.mxu0 0.0
    %933 = vmatprep.mubr.f32.mxu0 0.0
    %934 = vmatmul.mubr.f32.gmra.mxu0 %v796
    %v935 = vpop.f32.mrf.mxu0
    %v936 = vadd.f32 0.0, %v935
    %v937 = vpop.f32.mrf.mxu0
    %v938 = vadd.f32 0.0, %v937
    %939 = vdwg.mxu0
    %v940 = vld [vmem:[%s6] sm:$0xff]
    %v941 = vld [vmem:[%s7] sm:$0xff]
    %v942 = vadd.f32 %v865, %v867
    %v943 = vadd.f32 %v942, %v936
    %v944 = vadd.f32 %v943, %v938
    %945 = vadd.xlane.f32.xlu0 %v944
    %v946 = vpop.xlane.xlu0 %945
    %v947 = vmul.f32 %v946, 0.001953125
    %v948 = vsub.f32 %v865, %v947
    %v949 = vsub.f32 %v867, %v947
    %v950 = vsub.f32 %v936, %v947
    %v951 = vsub.f32 %v938, %v947
    %v952 = vmul.f32 %v948, %v948
    %v953 = vmul.f32 %v949, %v949
    %v954 = vmul.f32 %v950, %v950
    %v955 = vmul.f32 %v951, %v951
    %v956 = vadd.f32 %v952, %v953
    %v957 = vadd.f32 %v956, %v954
    %v958 = vadd.f32 %v957, %v955
    %959 = vadd.xlane.f32.xlu0 %v958
    %v960 = vpop.xlane.xlu0 %959
    %v961 = vmul.f32 %v960, 0.001953125
    %v962 = vadd.f32 %v961, 1e-05
    %v963 = vrsqrt.pop %v962
    %v964 = vmul.f32 %v940, %v963
    %966 = vset.pattern.permute.xlu0 0
    %967 = vperm.xlu0 %966, %v964
    %v968 = vpop.permute.xlu0 %967
    %v970 = vmul.f32 %v948, %v968
    %v971 = vmul.f32 %v949, %v968
    %v972 = vmul.f32 %v950, %v968
    %v973 = vmul.f32 %v951, %v968
    %975 = vset.pattern.permute.xlu0 0
    %976 = vperm.xlu0 %975, %v941
    %v977 = vpop.permute.xlu0 %976
    %v979 = vadd.f32 %v970, %v977
    %v980 = vadd.f32 %v971, %v977
    %v981 = vadd.f32 %v972, %v977
    %v982 = vadd.f32 %v973, %v977
    %v983 = vadd.f32 %v979, %v54
    %v984 = vadd.f32 %v980, %v55
    %v985 = vadd.f32 %v981, %v56
    %v986 = vadd.f32 %v982, %v57
    %v987 = vmax.f32 %v983, 0.0
    %v988 = vmax.f32 %v984, 0.0
    %v989 = vmax.f32 %v985, 0.0
    %v990 = vmax.f32 %v986, 0.0
    %991 = vst [vmem:[#allocation8] sm:$0xff] %v987
    %992 = vst [vmem:[#allocation8 + $0x8] sm:$0xff] %v988
    %993 = vst [vmem:[#allocation8 + $0x10] sm:$0xff] %v989
    %994 = vst [vmem:[#allocation8 + $0x18] sm:$0xff] %v990
    // Predicated region
    $region42: #{tpu_custom_call.1} parent=1 // pred_check
      _
    $region43: #{tpu_custom_call.1} parent=1 // pred_check_branch
      %996 = sbr.rel (0) target = $region45
    $region44: #{tpu_custom_call.1} parent=1 // pred_region
      %s998 = ssub.s32 512, 512
      %999 = vsyncadd [#allocation5], %s998
      %s1001 = sshll.u32 [#allocation8], 4
      %s1002 = int_to_ptr.vmem [resolvable:$true] %s1001
      %1004 = dma.vmem_to_hbm [thread:$0]  %s1002, 512, %s8, [#allocation5]
    $region45: #{tpu_custom_call.1} parent=1 // pred_fallthru
      _
    // Predicated region
    $region46: #{tpu_custom_call.1} parent=1 // pred_check
      _
    $region47: #{tpu_custom_call.1} parent=1 // pred_check_branch
      %1006 = sbr.rel (0) target = $region49
    $region48: #{tpu_custom_call.1} parent=1 // pred_region
      %1007 = dma.done [#allocation5], 512
    $region49: #{tpu_custom_call.1} parent=1 // pred_fallthru
      _
    %1008 = vsyncpa [#allocation4], 1
    %1009 = vsyncpa [#allocation7], 1
    %1010 = vsyncpa [#allocation5], 1

</llo_original>
